<compile_context>
chip_gen: v7x
topology: tpu7x:2x2x1
jax: 0.10.0
libtpu: 0.0.40
codegen_flags: <defaults>
</compile_context>

<pallas_src>
import functools

import jax
import jax.numpy as jnp
from jax.experimental import pallas as pl
from jax.experimental.pallas import tpu as pltpu

EPS = 1e-5  # nn.LayerNorm default


def _round_up(x, n):
    return (x + n - 1) // n * n


def _layernorm(x, gamma, beta):
    mean = jnp.mean(x, axis=-1, keepdims=True)
    var = jnp.mean((x - mean) ** 2, axis=-1, keepdims=True)
    xn = (x - mean) * jax.lax.rsqrt(var + EPS)
    return xn * gamma + beta


def prenorm_kernel(x_ref, g1_ref, b1_ref, w_ref, bias_ref, g2_ref, b2_ref,
                   o_ref, *, sandwich):
    # Pre-norm in f32 (VPU/EUP), matmul in bf16 on the MXU with f32 accumulate.
    x = x_ref[...].astype(jnp.float32)

    xn = _layernorm(x, g1_ref[...], b1_ref[...])          # f32 params, no cast

    # fn(x) = x @ W + b.  W is stored bf16 (halves HBM/VMEM); cast xn to bf16
    # so the MXU runs a native bf16 pass instead of a multi-pass f32 matmul.
    y = jnp.dot(xn.astype(jnp.bfloat16), w_ref[...],
                preferred_element_type=jnp.float32)
    y = y + bias_ref[...]

    if sandwich:
        y = _layernorm(y, g2_ref[...], b2_ref[...])

    o_ref[...] = y.astype(o_ref.dtype)


def prenorm(x, params, *, sandwich=True, tile_rows=512):
    """x: (batch, seq, dim) -> (batch, seq, dim)."""
    b, s, d = x.shape
    m = b * s
    x2 = x.reshape(m, d)

    g1, b1, w, bias, g2, b2 = params
    # Params as 2-D (1, dim) f32; W as (dim_in, dim_out) bf16 for the MXU.
    g1 = g1.reshape(1, d).astype(jnp.float32)
    b1 = b1.reshape(1, d).astype(jnp.float32)
    bias = bias.reshape(1, d).astype(jnp.float32)
    g2 = g2.reshape(1, d).astype(jnp.float32)
    b2 = b2.reshape(1, d).astype(jnp.float32)
    w_bf16 = w.astype(jnp.bfloat16)

    # --- Row-tile selection ---------------------------------------------
    itemsize = jnp.dtype(x.dtype).itemsize
    sub = 16 if x.dtype == jnp.bfloat16 else 8      # sublane packing minimum
    tm = max(sub, min(_round_up(tile_rows, sub), _round_up(m, sub)))

    def tile_vmem_bytes(t):
        x_b = 2 * t * d * itemsize          # x tile, double-buffered
        o_b = 2 * t * d * itemsize          # out tile, double-buffered
        w_b = 2 * d * d * 2                 # bf16 W, double-buffered
        p_b = 2 * 5 * d * 4                 # gamma/beta/bias (f32)
        acc = t * d * 4                     # in-flight f32 intermediates
        return x_b + o_b + w_b + p_b + acc

    # Conservative budget that fits v5e's 16 MiB default scoped VMEM as well
    # as v7x's 64 MiB physical VMEM; shrink tm if a big `dim` blows it.
    budget = 24 * 1024 * 1024
    while tm > sub and tile_vmem_bytes(tm) > budget:
        tm = max(sub, _round_up(tm // 2, sub))

    # Pad rows so the grid is exact (no "tm = m" fallback / giant block).
    m_pad = _round_up(m, tm)
    if m_pad != m:
        x2 = jnp.pad(x2, ((0, m_pad - m), (0, 0)))
    grid = (m_pad // tm,)

    vmem_limit = int(min(100 * 1024 * 1024,
                         max(32 * 1024 * 1024,
                             tile_vmem_bytes(tm) + 8 * 1024 * 1024)))

    kernel = functools.partial(prenorm_kernel, sandwich=sandwich)

    out = pl.pallas_call(
        kernel,
        out_shape=jax.ShapeDtypeStruct((m_pad, d), x.dtype),
        grid_spec=pltpu.PrefetchScalarGridSpec(
            num_scalar_prefetch=0,
            grid=grid,
            in_specs=[
                pl.BlockSpec((tm, d), lambda i: (i, 0)),   # x rows
                pl.BlockSpec((1, d), lambda i: (0, 0)),    # gamma1 (f32)
                pl.BlockSpec((1, d), lambda i: (0, 0)),    # beta1  (f32)
                pl.BlockSpec((d, d), lambda i: (0, 0)),    # W      (bf16)
                pl.BlockSpec((1, d), lambda i: (0, 0)),    # bias   (f32)
                pl.BlockSpec((1, d), lambda i: (0, 0)),    # gamma2 (f32)
                pl.BlockSpec((1, d), lambda i: (0, 0)),    # beta2  (f32)
            ],
            out_specs=pl.BlockSpec((tm, d), lambda i: (i, 0)),
        ),
        compiler_params=pltpu.CompilerParams(
            dimension_semantics=("parallel",),
            vmem_limit_bytes=vmem_limit),
    )(x2, g1, b1, w_bf16, bias, g2, b2)

    return out[:m].reshape(b, s, d)


def init_params(key, dim):
    # LayerNorm params: gamma=1, beta=0 (PyTorch default init).
    g1 = jnp.ones((dim,), jnp.float32)
    b1 = jnp.zeros((dim,), jnp.float32)
    g2 = jnp.ones((dim,), jnp.float32)
    b2 = jnp.zeros((dim,), jnp.float32)
    # Linear(dim, dim) params: deterministic uniform init (Kaiming-like bound).
    kw, kb = jax.random.split(key)
    bound = 1.0 / (dim ** 0.5)
    w = jax.random.uniform(kw, (dim, dim), jnp.float32, -bound, bound)
    bias = jax.random.uniform(kb, (dim,), jnp.float32, -bound, bound)
    return g1, b1, w, bias, g2, b2


def prenorm_ref(x, params, *, sandwich=True):
    g1, b1, w, bias, g2, b2 = params

    def ln(v, g, bb):
        mu = jnp.mean(v, axis=-1, keepdims=True)
        var = jnp.mean((v - mu) ** 2, axis=-1, keepdims=True)
        return (v - mu) * jax.lax.rsqrt(var + EPS) * g + bb

    y = ln(x, g1, b1)
    y = y @ w + bias
    if sandwich:
        y = ln(y, g2, b2)
    return y


if __name__ == "__main__":
    key = jax.random.PRNGKey(0)
    kx, kp = jax.random.split(key)

    batch, seq, dim = 2, 8, 32
    x = jax.random.normal(kx, (batch, seq, dim), jnp.float32)
    params = init_params(kp, dim)

    out = prenorm(x, params, sandwich=True)
    out = jax.block_until_ready(out)

    ref = prenorm_ref(x, params, sandwich=True)
    assert out.shape == (batch, seq, dim)
    # bf16 MXU operands (f32 accumulate) vs pure-f32 reference -> relaxed tol.
    assert jnp.allclose(out, ref, atol=2e-2, rtol=2e-2), (
        float(jnp.max(jnp.abs(out - ref))))

    # TODO(synk): PreNorm's `fn` is an arbitrary submodule; it is instantiated
    # here as Linear(dim, dim). Other `fn`s would need their own kernels.
    print("KERNEL_OK")
</pallas_src>

<mosaic_0001>
module attributes {stable_mosaic.version = 11 : i64} {
  func.func @prenorm_kernel(%arg0: i32, %arg1: memref<16x32xf32, #tpu.memory_space<vmem>>, %arg2: memref<1x32xf32, #tpu.memory_space<vmem>>, %arg3: memref<1x32xf32, #tpu.memory_space<vmem>>, %arg4: memref<32x32xbf16, #tpu.memory_space<vmem>>, %arg5: memref<1x32xf32, #tpu.memory_space<vmem>>, %arg6: memref<1x32xf32, #tpu.memory_space<vmem>>, %arg7: memref<1x32xf32, #tpu.memory_space<vmem>>, %arg8: memref<16x32xf32, #tpu.memory_space<vmem>>) attributes {dimension_semantics = [#tpu.dimension_semantics<parallel>], iteration_bounds = array<i64: 1>, scalar_prefetch = 0 : i64, scratch_operands = 0 : i64, tpu.core_type = #tpu.core_type<tc>, window_params = [{transform_indices = @transform_0, window_bounds = array<i64: 16, 32>}, {pipeline_mode = #tpu.pipeline_mode<synchronous>, transform_indices = @transform_1, window_bounds = array<i64: 1, 32>}, {pipeline_mode = #tpu.pipeline_mode<synchronous>, transform_indices = @transform_2, window_bounds = array<i64: 1, 32>}, {pipeline_mode = #tpu.pipeline_mode<synchronous>, transform_indices = @transform_3, window_bounds = array<i64: 32, 32>}, {pipeline_mode = #tpu.pipeline_mode<synchronous>, transform_indices = @transform_4, window_bounds = array<i64: 1, 32>}, {pipeline_mode = #tpu.pipeline_mode<synchronous>, transform_indices = @transform_5, window_bounds = array<i64: 1, 32>}, {pipeline_mode = #tpu.pipeline_mode<synchronous>, transform_indices = @transform_6, window_bounds = array<i64: 1, 32>}, {transform_indices = @transform_7, window_bounds = array<i64: 16, 32>}]} {
    %c0 = arith.constant 0 : index
    %c0_0 = arith.constant 0 : index
    %0 = vector.load %arg1[%c0, %c0_0] : memref<16x32xf32, #tpu.memory_space<vmem>>, vector<16x32xf32>
    %c0_1 = arith.constant 0 : index
    %c0_2 = arith.constant 0 : index
    %1 = vector.load %arg2[%c0_1, %c0_2] : memref<1x32xf32, #tpu.memory_space<vmem>>, vector<1x32xf32>
    %c0_3 = arith.constant 0 : index
    %c0_4 = arith.constant 0 : index
    %2 = vector.load %arg3[%c0_3, %c0_4] : memref<1x32xf32, #tpu.memory_space<vmem>>, vector<1x32xf32>
    %cst = arith.constant dense<0.000000e+00> : vector<16xf32>
    %3 = vector.multi_reduction <add>, %0, %cst [1] : vector<16x32xf32> to vector<16xf32>
    %4 = vector.shape_cast %3 : vector<16xf32> to vector<16x1xf32>
    %cst_5 = arith.constant 3.200000e+01 : f32
    %5 = vector.broadcast %cst_5 : f32 to vector<16x1xf32>
    %6 = arith.divf %4, %5 : vector<16x1xf32>
    %7 = vector.broadcast %6 : vector<16x1xf32> to vector<16x32xf32>
    %8 = arith.subf %0, %7 : vector<16x32xf32>
    %9 = arith.mulf %8, %8 : vector<16x32xf32>
    %cst_6 = arith.constant dense<0.000000e+00> : vector<16xf32>
    %10 = vector.multi_reduction <add>, %9, %cst_6 [1] : vector<16x32xf32> to vector<16xf32>
    %11 = vector.shape_cast %10 : vector<16xf32> to vector<16x1xf32>
    %cst_7 = arith.constant 3.200000e+01 : f32
    %12 = vector.broadcast %cst_7 : f32 to vector<16x1xf32>
    %13 = arith.divf %11, %12 : vector<16x1xf32>
    %14 = vector.broadcast %6 : vector<16x1xf32> to vector<16x32xf32>
    %15 = arith.subf %0, %14 : vector<16x32xf32>
    %cst_8 = arith.constant 9.99999974E-6 : f32
    %16 = vector.broadcast %cst_8 : f32 to vector<16x1xf32>
    %17 = arith.addf %13, %16 : vector<16x1xf32>
    %18 = math.rsqrt %17 : vector<16x1xf32>
    %19 = vector.broadcast %18 : vector<16x1xf32> to vector<16x32xf32>
    %20 = arith.mulf %15, %19 : vector<16x32xf32>
    %21 = vector.broadcast %1 : vector<1x32xf32> to vector<16x32xf32>
    %22 = arith.mulf %20, %21 : vector<16x32xf32>
    %23 = vector.broadcast %2 : vector<1x32xf32> to vector<16x32xf32>
    %24 = arith.addf %22, %23 : vector<16x32xf32>
    %25 = arith.truncf %24 : vector<16x32xf32> to vector<16x32xbf16>
    %c0_9 = arith.constant 0 : index
    %c0_10 = arith.constant 0 : index
    %26 = vector.load %arg4[%c0_9, %c0_10] : memref<32x32xbf16, #tpu.memory_space<vmem>>, vector<32x32xbf16>
    %cst_11 = arith.constant dense<0.000000e+00> : vector<16x32xf32>
    %27 = tpu.matmul %25, %26, %cst_11 {dimension_numbers = #tpu.dot_dimension_numbers<[1], [0], [0], [1], [0, 0, 1, 1], [], []>} : vector<16x32xbf16>, vector<32x32xbf16>, vector<16x32xf32> -> vector<16x32xf32>
    %c0_12 = arith.constant 0 : index
    %c0_13 = arith.constant 0 : index
    %28 = vector.load %arg5[%c0_12, %c0_13] : memref<1x32xf32, #tpu.memory_space<vmem>>, vector<1x32xf32>
    %29 = vector.broadcast %28 : vector<1x32xf32> to vector<16x32xf32>
    %30 = arith.addf %27, %29 : vector<16x32xf32>
    %c0_14 = arith.constant 0 : index
    %c0_15 = arith.constant 0 : index
    %31 = vector.load %arg6[%c0_14, %c0_15] : memref<1x32xf32, #tpu.memory_space<vmem>>, vector<1x32xf32>
    %c0_16 = arith.constant 0 : index
    %c0_17 = arith.constant 0 : index
    %32 = vector.load %arg7[%c0_16, %c0_17] : memref<1x32xf32, #tpu.memory_space<vmem>>, vector<1x32xf32>
    %cst_18 = arith.constant dense<0.000000e+00> : vector<16xf32>
    %33 = vector.multi_reduction <add>, %30, %cst_18 [1] : vector<16x32xf32> to vector<16xf32>
    %34 = vector.shape_cast %33 : vector<16xf32> to vector<16x1xf32>
    %cst_19 = arith.constant 3.200000e+01 : f32
    %35 = vector.broadcast %cst_19 : f32 to vector<16x1xf32>
    %36 = arith.divf %34, %35 : vector<16x1xf32>
    %37 = vector.broadcast %36 : vector<16x1xf32> to vector<16x32xf32>
    %38 = arith.subf %30, %37 : vector<16x32xf32>
    %39 = arith.mulf %38, %38 : vector<16x32xf32>
    %cst_20 = arith.constant dense<0.000000e+00> : vector<16xf32>
    %40 = vector.multi_reduction <add>, %39, %cst_20 [1] : vector<16x32xf32> to vector<16xf32>
    %41 = vector.shape_cast %40 : vector<16xf32> to vector<16x1xf32>
    %cst_21 = arith.constant 3.200000e+01 : f32
    %42 = vector.broadcast %cst_21 : f32 to vector<16x1xf32>
    %43 = arith.divf %41, %42 : vector<16x1xf32>
    %44 = vector.broadcast %36 : vector<16x1xf32> to vector<16x32xf32>
    %45 = arith.subf %30, %44 : vector<16x32xf32>
    %cst_22 = arith.constant 9.99999974E-6 : f32
    %46 = vector.broadcast %cst_22 : f32 to vector<16x1xf32>
    %47 = arith.addf %43, %46 : vector<16x1xf32>
    %48 = math.rsqrt %47 : vector<16x1xf32>
    %49 = vector.broadcast %48 : vector<16x1xf32> to vector<16x32xf32>
    %50 = arith.mulf %45, %49 : vector<16x32xf32>
    %51 = vector.broadcast %31 : vector<1x32xf32> to vector<16x32xf32>
    %52 = arith.mulf %50, %51 : vector<16x32xf32>
    %53 = vector.broadcast %32 : vector<1x32xf32> to vector<16x32xf32>
    %54 = arith.addf %52, %53 : vector<16x32xf32>
    %c0_23 = arith.constant 0 : index
    %c0_24 = arith.constant 0 : index
    %55 = vector.load %arg8[%c0_23, %c0_24] : memref<16x32xf32, #tpu.memory_space<vmem>>, vector<16x32xf32>
    tpu.vector_store %arg8[%c0_23, %c0_24], %54 {strides = array<i32>} : memref<16x32xf32, #tpu.memory_space<vmem>>, vector<16x32xf32>,
    return
  }
  func.func @transform_0(%arg0: i32) -> (i32, i32) {
    %c0_i32 = arith.constant 0 : i32
    %c0_i32_0 = arith.constant 0 : i32
    return %arg0, %c0_i32 : i32, i32
  }
  func.func @transform_1(%arg0: i32) -> (i32, i32) {
    %c0_i32 = arith.constant 0 : i32
    %c0_i32_0 = arith.constant 0 : i32
    %c0_i32_1 = arith.constant 0 : i32
    return %c0_i32, %c0_i32_0 : i32, i32
  }
  func.func @transform_2(%arg0: i32) -> (i32, i32) {
    %c0_i32 = arith.constant 0 : i32
    %c0_i32_0 = arith.constant 0 : i32
    %c0_i32_1 = arith.constant 0 : i32
    return %c0_i32, %c0_i32_0 : i32, i32
  }
  func.func @transform_3(%arg0: i32) -> (i32, i32) {
    %c0_i32 = arith.constant 0 : i32
    %c0_i32_0 = arith.constant 0 : i32
    %c0_i32_1 = arith.constant 0 : i32
    return %c0_i32, %c0_i32_0 : i32, i32
  }
  func.func @transform_4(%arg0: i32) -> (i32, i32) {
    %c0_i32 = arith.constant 0 : i32
    %c0_i32_0 = arith.constant 0 : i32
    %c0_i32_1 = arith.constant 0 : i32
    return %c0_i32, %c0_i32_0 : i32, i32
  }
  func.func @transform_5(%arg0: i32) -> (i32, i32) {
    %c0_i32 = arith.constant 0 : i32
    %c0_i32_0 = arith.constant 0 : i32
    %c0_i32_1 = arith.constant 0 : i32
    return %c0_i32, %c0_i32_0 : i32, i32
  }
  func.func @transform_6(%arg0: i32) -> (i32, i32) {
    %c0_i32 = arith.constant 0 : i32
    %c0_i32_0 = arith.constant 0 : i32
    %c0_i32_1 = arith.constant 0 : i32
    return %c0_i32, %c0_i32_0 : i32, i32
  }
  func.func @transform_7(%arg0: i32) -> (i32, i32) {
    %c0_i32 = arith.constant 0 : i32
    %c0_i32_0 = arith.constant 0 : i32
    return %arg0, %c0_i32 : i32, i32
  }
}

</mosaic_0001>

<llo_original>
// kernel: tpu_custom_call.1
$region0: #{tpu_custom_call.1}
  #allocation0 [shape = 'u32[]', space=smem, size = 0x4, offset = 0x4, fixed_abs, tag = 'smem constant byte address 0x4 - core index']
  #allocation1 [shape = 'u32[144,128]{1,0:T(1,128)}', space=vmem, size = 0x12000, scoped, tag = 'internal scratch']
  %s0 = inlined_call_operand.hbm [shape: f32[16,32], index: 0, kind: input, shape index: {}]
  %s1 = inlined_call_operand.vmem [shape: f32[1,32], index: 1, kind: input, shape index: {}]
  %s2 = inlined_call_operand.vmem [shape: f32[1,32], index: 2, kind: input, shape index: {}]
  %s3 = inlined_call_operand.hbm [shape: bf16[32,32], index: 3, kind: input, shape index: {}]
  %s4 = inlined_call_operand.vmem [shape: f32[1,32], index: 4, kind: input, shape index: {}]
  %s5 = inlined_call_operand.vmem [shape: f32[1,32], index: 5, kind: input, shape index: {}]
  %s6 = inlined_call_operand.vmem [shape: f32[1,32], index: 6, kind: input, shape index: {}]
  %s7 = inlined_call_operand.hbm [shape: f32[16,32], index: 7, kind: output, shape index: {}]
  %s8 = sld [smem:[#allocation0]]
  $region46: #{tpu_custom_call.1} parent=0
    _
  %s10 = ssub.s32 1, %s8
  %s11 = scalar_select 0, %s10, %s8
  $region1: #{tpu_custom_call.1} parent=0
    #allocation2 [shape = 'u8[8192]{0}', space=vmem, size = 0x2000, scoped, tag = 'input window, operand 0, single buffered']
    #allocation3 [shape = 's32[1]{0}', space=sflag, size = 0x4, scoped, tag = 'scoped memory for tpu_custom_call.1']
    #allocation4 [shape = 's32[1]{0}', space=sflag, size = 0x4, scoped, tag = 'scoped memory for tpu_custom_call.1']
    #allocation5 [shape = 'u8[8192]{0}', space=vmem, size = 0x2000, scoped, tag = 'input window, operand 3, single buffered']
    #allocation6 [shape = 's32[1]{0}', space=sflag, size = 0x4, scoped, tag = 'scoped memory for tpu_custom_call.1']
    #allocation7 [shape = 'u8[8192]{0}', space=vmem, size = 0x2000, scoped, tag = 'output window, operand 0, single buffered']
    %12 = vsyncpa [#allocation3], 0
    %13 = vsyncpa [#allocation6], 0
    %14 = vsyncpa [#allocation4], 0
    // Predicated region
    $region2: #{tpu_custom_call.1} parent=1 // pred_check
      _
    $region3: #{tpu_custom_call.1} parent=1 // pred_check_branch
      %16 = sbr.rel (0) target = $region5
    $region4: #{tpu_custom_call.1} parent=1 // pred_region
      %s18 = ssub.s32 256, 256
      %19 = vsyncadd [#allocation3], %s18
      %s20 = sshll.u32 [#allocation2], 4
      %s21 = int_to_ptr.vmem [resolvable:$true] %s20
      %26 = dma.hbm_to_vmem [thread:$0]  %s0, 256, %s21, [#allocation3], 128, 128, 8
    $region5: #{tpu_custom_call.1} parent=1 // pred_fallthru
      _
    // Predicated region
    $region6: #{tpu_custom_call.1} parent=1 // pred_check
      _
    $region7: #{tpu_custom_call.1} parent=1 // pred_check_branch
      %28 = sbr.rel (0) target = $region9
    $region8: #{tpu_custom_call.1} parent=1 // pred_region
      _
    $region9: #{tpu_custom_call.1} parent=1 // pred_fallthru
      _
    // Predicated region
    $region10: #{tpu_custom_call.1} parent=1 // pred_check
      _
    $region11: #{tpu_custom_call.1} parent=1 // pred_check_branch
      %30 = sbr.rel (0) target = $region13
    $region12: #{tpu_custom_call.1} parent=1 // pred_region
      _
    $region13: #{tpu_custom_call.1} parent=1 // pred_fallthru
      _
    // Predicated region
    $region14: #{tpu_custom_call.1} parent=1 // pred_check
      _
    $region15: #{tpu_custom_call.1} parent=1 // pred_check_branch
      %32 = sbr.rel (0) target = $region17
    $region16: #{tpu_custom_call.1} parent=1 // pred_region
      %s34 = ssub.s32 256, 256
      %35 = vsyncadd [#allocation6], %s34
      %s36 = sshll.u32 [#allocation5], 4
      %s37 = int_to_ptr.vmem [resolvable:$true] %s36
      %42 = dma.hbm_to_vmem [thread:$0]  %s3, 256, %s37, [#allocation6], 64, 64, 4
    $region17: #{tpu_custom_call.1} parent=1 // pred_fallthru
      _
    // Predicated region
    $region18: #{tpu_custom_call.1} parent=1 // pred_check
      _
    $region19: #{tpu_custom_call.1} parent=1 // pred_check_branch
      %44 = sbr.rel (0) target = $region21
    $region20: #{tpu_custom_call.1} parent=1 // pred_region
      _
    $region21: #{tpu_custom_call.1} parent=1 // pred_fallthru
      _
    // Predicated region
    $region22: #{tpu_custom_call.1} parent=1 // pred_check
      _
    $region23: #{tpu_custom_call.1} parent=1 // pred_check_branch
      %46 = sbr.rel (0) target = $region25
    $region24: #{tpu_custom_call.1} parent=1 // pred_region
      _
    $region25: #{tpu_custom_call.1} parent=1 // pred_fallthru
      _
    // Predicated region
    $region26: #{tpu_custom_call.1} parent=1 // pred_check
      _
    $region27: #{tpu_custom_call.1} parent=1 // pred_check_branch
      %48 = sbr.rel (0) target = $region29
    $region28: #{tpu_custom_call.1} parent=1 // pred_region
      _
    $region29: #{tpu_custom_call.1} parent=1 // pred_fallthru
      _
    // Predicated region
    $region30: #{tpu_custom_call.1} parent=1 // pred_check
      _
    $region31: #{tpu_custom_call.1} parent=1 // pred_check_branch
      %50 = sbr.rel (0) target = $region33
    $region32: #{tpu_custom_call.1} parent=1 // pred_region
      %51 = dma.done [#allocation3], 256
    $region33: #{tpu_custom_call.1} parent=1 // pred_fallthru
      _
    // Predicated region
    $region34: #{tpu_custom_call.1} parent=1 // pred_check
      _
    $region35: #{tpu_custom_call.1} parent=1 // pred_check_branch
      %53 = sbr.rel (0) target = $region37
    $region36: #{tpu_custom_call.1} parent=1 // pred_region
      %54 = dma.done [#allocation6], 256
    $region37: #{tpu_custom_call.1} parent=1 // pred_fallthru
      _
    %v56 = vld [vmem:[#allocation2] sm:$0xff]
    %v57 = vld [vmem:[#allocation2 + $0x8] sm:$0xff]
    %v58 = vld [vmem:[%s1] sm:$0x1]
    %v59 = vld [vmem:[%s2] sm:$0x1]
    %vm60 = vcmask 261120
    %v61 = vsel %vm60, %v56, 0.0
    %62 = vadd.xlane.f32.xlu0 %v61
    %v63 = vpop.xlane.xlu0 %62
    %v64 = vsel %vm60, %v57, 0.0
    %65 = vadd.xlane.f32.xlu0 %v64
    %v66 = vpop.xlane.xlu0 %65
    %v67 = vrcp.pop 32.0
    %v68 = vmul.f32 %v63, %v67
    %v69 = vmul.f32 %v66, %v67
    %v70 = vsub.f32 %v56, %v68
    %v71 = vsub.f32 %v57, %v69
    %v72 = vmul.f32 %v70, %v70
    %v73 = vmul.f32 %v71, %v71
    %v74 = vsel %vm60, %v72, 0.0
    %75 = vadd.xlane.f32.xlu0 %v74
    %v76 = vpop.xlane.xlu0 %75
    %v77 = vsel %vm60, %v73, 0.0
    %78 = vadd.xlane.f32.xlu0 %v77
    %v79 = vpop.xlane.xlu0 %78
    %v80 = vmul.f32 %v76, %v67
    %v81 = vmul.f32 %v79, %v67
    %v82 = vadd.f32 %v80, 1e-05
    %v83 = vadd.f32 %v81, 1e-05
    %v84 = vrsqrt.pop %v82
    %v85 = vrsqrt.pop %v83
    %v86 = vmul.f32 %v70, %v84
    %v87 = vmul.f32 %v71, %v85
    %v89 = vlaneseq
    %v90 = vshrl.u32 %v89, 7
    %v91 = vsub.s32 0, %v90
    %v92 = vrot.slane %v58, %v91
    %v94 = vmul.f32 %v86, %v92
    %v95 = vmul.f32 %v87, %v92
    %v97 = vlaneseq
    %v98 = vshrl.u32 %v97, 7
    %v99 = vsub.s32 0, %v98
    %v100 = vrot.slane %v59, %v99
    %v102 = vadd.f32 %v94, %v100
    %v103 = vadd.f32 %v95, %v100
    %v104 = vpack.c.bf16 %v103, %v102
    %v105 = vld [vmem:[#allocation5] sm:$0xf]
    %v106 = vld [vmem:[#allocation5 + $0x4] sm:$0xf]
    %v107 = vld [vmem:[#allocation5 + $0x8] sm:$0xf]
    %v108 = vld [vmem:[#allocation5 + $0xc] sm:$0xf]
    %v109 = vld [vmem:[%s4] sm:$0x1]
    %v111 = vlaneseq
    %v112 = vshrl.u32 %v111, 7
    %v113 = vsub.s32 0, %v112
    %v114 = vrot.slane %v109, %v113
    %v120 = vunpack.c.l.b16 %v105
    %v121 = vunpack.c.l.b16 %v106
    %v122 = vunpack.c.l.b16 %v107
    %v123 = vunpack.c.l.b16 %v108
    %v124 = vpack.c.b16 %v121, %v120
    %v125 = vpack.c.b16 %v123, %v122
    %v129 = vsel %vm60, %v104, 0
    %131 = vmatprep.subr.bf16.mxu0 0
    %132 = vmatpush1.bf16.msra.mxu0 %v124
    %133 = vmatprep.subr.bf16.mxu0 0
    %134 = vmatpush1.bf16.msra.mxu0 %v125
    %135 = vmatprep.subr.bf16.mxu0 0
    %136 = vmatpush1.bf16.msra.mxu0 0
    %137 = vmatprep.subr.bf16.mxu0 0
    %138 = vmatpush1.bf16.msra.mxu0 0
    %139 = vmatprep.subr.bf16.mxu0 0
    %140 = vmatpush1.bf16.msra.mxu0 0
    %141 = vmatprep.subr.bf16.mxu0 0
    %142 = vmatpush1.bf16.msra.mxu0 0
    %143 = vmatprep.subr.bf16.mxu0 0
    %144 = vmatpush1.bf16.msra.mxu0 0
    %145 = vmatprep.subr.bf16.mxu0 0
    %146 = vmatpush1.bf16.msra.mxu0 0
    %147 = vmatprep.subr.bf16.mxu0 0
    %148 = vmatpush1.bf16.msra.mxu0 0
    %149 = vmatprep.subr.bf16.mxu0 0
    %150 = vmatpush1.bf16.msra.mxu0 0
    %151 = vmatprep.subr.bf16.mxu0 0
    %152 = vmatpush1.bf16.msra.mxu0 0
    %153 = vmatprep.subr.bf16.mxu0 0
    %154 = vmatpush1.bf16.msra.mxu0 0
    %155 = vmatprep.subr.bf16.mxu0 0
    %156 = vmatpush1.bf16.msra.mxu0 0
    %157 = vmatprep.subr.bf16.mxu0 0
    %158 = vmatpush1.bf16.msra.mxu0 0
    %159 = vmatprep.subr.bf16.mxu0 0
    %160 = vmatpush1.bf16.msra.mxu0 0
    %161 = vmatprep.subr.bf16.mxu0 0
    %162 = vmatpush1.bf16.msra.mxu0 0
    %163 = vmatprep.mubr.bf16.mxu0 0
    %164 = vmatmul.mubr.bf16.gmra.mrb[0].mxu0 %v129
    %v165 = vpop.f32.mrb[0].mxu0
    %v166 = vadd.f32 %v114, %v165
    %v167 = vpop.f32.mrb[0].mxu0
    %v168 = vpop.f32.mrb[0].mxu0
    %v169 = vadd.f32 %v114, %v168
    %v170 = vpop.f32.mrb[0].mxu0
    %171 = vdwg.mxu0
    %v172 = vld [vmem:[%s5] sm:$0x1]
    %v173 = vld [vmem:[%s6] sm:$0x1]
    %v174 = vsel %vm60, %v166, 0.0
    %175 = vadd.xlane.f32.xlu0 %v174
    %v176 = vpop.xlane.xlu0 %175
    %v177 = vsel %vm60, %v169, 0.0
    %178 = vadd.xlane.f32.xlu0 %v177
    %v179 = vpop.xlane.xlu0 %178
    %v180 = vmul.f32 %v176, %v67
    %v181 = vmul.f32 %v179, %v67
    %v182 = vsub.f32 %v166, %v180
    %v183 = vsub.f32 %v169, %v181
    %v184 = vmul.f32 %v182, %v182
    %v185 = vmul.f32 %v183, %v183
    %v186 = vsel %vm60, %v184, 0.0
    %187 = vadd.xlane.f32.xlu0 %v186
    %v188 = vpop.xlane.xlu0 %187
    %v189 = vsel %vm60, %v185, 0.0
    %190 = vadd.xlane.f32.xlu0 %v189
    %v191 = vpop.xlane.xlu0 %190
    %v192 = vmul.f32 %v188, %v67
    %v193 = vmul.f32 %v191, %v67
    %v194 = vadd.f32 %v192, 1e-05
    %v195 = vadd.f32 %v193, 1e-05
    %v196 = vrsqrt.pop %v194
    %v197 = vrsqrt.pop %v195
    %v198 = vmul.f32 %v182, %v196
    %v199 = vmul.f32 %v183, %v197
    %v201 = vlaneseq
    %v202 = vshrl.u32 %v201, 7
    %v203 = vsub.s32 0, %v202
    %v204 = vrot.slane %v172, %v203
    %v206 = vmul.f32 %v198, %v204
    %v207 = vmul.f32 %v199, %v204
    %v209 = vlaneseq
    %v210 = vshrl.u32 %v209, 7
    %v211 = vsub.s32 0, %v210
    %v212 = vrot.slane %v173, %v211
    %v214 = vadd.f32 %v206, %v212
    %v215 = vadd.f32 %v207, %v212
    %216 = vst.msk [vmem:[#allocation7] sm:$0xff] %vm60, %v214
    %217 = vst.msk [vmem:[#allocation7 + $0x8] sm:$0xff] %vm60, %v215
    // Predicated region
    $region38: #{tpu_custom_call.1} parent=1 // pred_check
      _
    $region39: #{tpu_custom_call.1} parent=1 // pred_check_branch
      %219 = sbr.rel (0) target = $region41
    $region40: #{tpu_custom_call.1} parent=1 // pred_region
      %s221 = ssub.s32 256, 256
      %222 = vsyncadd [#allocation4], %s221
      %s223 = sshll.u32 [#allocation7], 4
      %s224 = int_to_ptr.vmem [resolvable:$true] %s223
      %229 = dma.vmem_to_hbm [thread:$0]  %s224, 256, %s7, [#allocation4], 128, 128, 8
    $region41: #{tpu_custom_call.1} parent=1 // pred_fallthru
      _
    // Predicated region
    $region42: #{tpu_custom_call.1} parent=1 // pred_check
      _
    $region43: #{tpu_custom_call.1} parent=1 // pred_check_branch
      %231 = sbr.rel (0) target = $region45
    $region44: #{tpu_custom_call.1} parent=1 // pred_region
      %232 = dma.done [#allocation4], 256
    $region45: #{tpu_custom_call.1} parent=1 // pred_fallthru
      _
    %233 = vsyncpa [#allocation3], 1
    %234 = vsyncpa [#allocation6], 1
    %235 = vsyncpa [#allocation4], 1

</llo_original>
